<compile_context>
chip_gen: v7x
topology: tpu7x:2x2x1
jax: 0.10.0
libtpu: 0.0.40
codegen_flags: <defaults>
</compile_context>

<pallas_src>
import functools

import jax
import jax.numpy as jnp
import numpy as np
from jax.experimental import pallas as pl
from jax.experimental.pallas import tpu as pltpu


def _irfft_matmul_kernel(a_ref, m_ref, o_ref):
    # a_ref: (TB, 2K) interleaved (real, imag) pairs   [bf16]
    # m_ref: (2K, N_pad) interleaved (cos, -sin) rows  [bf16]
    # o_ref: (TB, N_pad)                               [f32]
    o_ref[...] = jnp.dot(
        a_ref[...], m_ref[...], preferred_element_type=jnp.float32
    ).astype(o_ref.dtype)


@functools.lru_cache(maxsize=None)
def _synthesis_matrix(K: int, n: int, n_pad: int, dtype_name: str):
    """(2K, n_pad) inverse-rfft synthesis matrix, rows interleaved per bin."""
    kk = np.arange(K)
    k = kk.astype(np.float64)
    t = np.arange(n, dtype=np.float64)
    ang = 2.0 * np.pi * np.outer(k, t) / n
    dc_or_nyq = (kk == 0) | ((n % 2 == 0) & (kk == n // 2))
    w = np.where(dc_or_nyq, 1.0, 2.0)
    cos_m = (w[:, None] * np.cos(ang)) / n   # multiplies real parts
    sin_m = (-w[:, None] * np.sin(ang)) / n  # multiplies imag parts
    m = np.zeros((2 * K, n_pad), dtype=np.float32)  # zero cols beyond n (lane pad)
    m[0::2, :n] = cos_m
    m[1::2, :n] = sin_m
    return jnp.asarray(m, dtype=jnp.dtype(dtype_name))


def _select_tb(b8: int, k2: int, n_pad: int) -> int:
    # VMEM budget, conservative against v7x (64 MiB physical / 32 MiB scoped):
    #   2x A tile (bf16) + 2x O tile (f32) + 2x constant M tile (bf16).
    budget = 20 * 1024 * 1024
    m_bytes = 2 * k2 * n_pad * 2
    per_row = 2 * (k2 * 2 + n_pad * 4)
    tb = (budget - m_bytes) // per_row
    tb = min(tb, 512, b8)
    if b8 > 8:
        # Keep >= 2 grid steps so the (parallel) batch axis can shard across
        # both TensorCores on v7x and the pipeline overlaps HBM traffic.
        tb = min(tb, max(8, b8 // 2))
    return int(max(8, (tb // 8) * 8))


def ifft_decoder(freq_signal, out_dim: int = 128, *, use_pallas=None):
    x = jnp.asarray(freq_signal, jnp.float32)
    n_components = x.shape[-1] // 2
    x2d = x.reshape(-1, 2 * n_components)   # rows: (r0, i0, r1, i1, ...) — free reshape
    B = x2d.shape[0]

    n = int(out_dim)
    n_half = n // 2 + 1
    K = min(n_components, n_half)            # irfft crops (or zero-pads) to n//2+1
    K2 = 2 * K
    a = x2d[:, :K2]                           # contiguous prefix slice (crop only)

    N_pad = ((n + 127) // 128) * 128          # lane-dense output width

    small = (B <= 64) if use_pallas is None else (not use_pallas)
    if small:
        # Tiny batch: pallas_call fixed overhead dominates; plain fused dot.
        m32 = _synthesis_matrix(K, n, N_pad, "float32")
        return jnp.dot(a, m32)[:, :n]

    # bf16 inputs halve kernel HBM read traffic; accumulation stays f32.
    a = a.astype(jnp.bfloat16)
    m = _synthesis_matrix(K, n, N_pad, "bfloat16")

    B8 = ((B + 7) // 8) * 8
    TB = _select_tb(B8, K2, N_pad)
    B_pad = ((B + TB - 1) // TB) * TB
    if B_pad != B:
        a = jnp.pad(a, ((0, B_pad - B), (0, 0)))

    out = pl.pallas_call(
        _irfft_matmul_kernel,
        out_shape=jax.ShapeDtypeStruct((B_pad, N_pad), jnp.float32),
        grid_spec=pltpu.PrefetchScalarGridSpec(
            num_scalar_prefetch=0,
            grid=(B_pad // TB,),
            in_specs=[
                pl.BlockSpec((TB, K2), lambda i: (i, 0)),
                pl.BlockSpec((K2, N_pad), lambda i: (0, 0)),
            ],
            out_specs=pl.BlockSpec((TB, N_pad), lambda i: (i, 0)),
        ),
        compiler_params=pltpu.CompilerParams(
            dimension_semantics=("parallel",),
            vmem_limit_bytes=48 * 1024 * 1024,
        ),
    )(a, m)
    return out[:B, :n]


def _reference(freq_signal, out_dim):
    x = jnp.asarray(freq_signal, jnp.float32)
    n_components = x.shape[-1] // 2
    xc = x.reshape(-1, n_components, 2)
    return jnp.fft.irfft(xc[..., 0] + 1j * xc[..., 1], n=out_dim, axis=-1)


if __name__ == "__main__":
    key = jax.random.PRNGKey(0)

    # 1) Canonical small shape from the module; force the Pallas (bf16) path.
    out_dim = 128
    freq_signal = jax.random.normal(key, (2, 4, 16), dtype=jnp.float32)
    result = jax.block_until_ready(ifft_decoder(freq_signal, out_dim=out_dim, use_pallas=True))
    ref = jax.block_until_ready(_reference(freq_signal, out_dim))
    assert result.shape == ref.shape, (result.shape, ref.shape)
    assert jnp.allclose(result, ref, rtol=1e-2, atol=1e-2), float(jnp.max(jnp.abs(result - ref)))

    # 2) Larger batch (auto-dispatch -> Pallas, multi-step grid) + non-128 out_dim
    #    (exercises the lane-padded output path).
    fs2 = jax.random.normal(jax.random.PRNGKey(0), (4, 48, 16), dtype=jnp.float32)
    res2 = jax.block_until_ready(ifft_decoder(fs2, out_dim=100))
    ref2 = jax.block_until_ready(_reference(fs2, 100))
    assert res2.shape == ref2.shape, (res2.shape, ref2.shape)
    assert jnp.allclose(res2, ref2, rtol=1e-2, atol=1e-2), float(jnp.max(jnp.abs(res2 - ref2)))

    # 3) Crop path (n_components > out_dim//2 + 1), tiny batch -> f32 fallback.
    fs3 = jax.random.normal(jax.random.PRNGKey(0), (2, 4, 32), dtype=jnp.float32)
    res3 = jax.block_until_ready(ifft_decoder(fs3, out_dim=16))
    ref3 = jax.block_until_ready(_reference(fs3, 16))
    assert res3.shape == ref3.shape, (res3.shape, ref3.shape)
    assert jnp.allclose(res3, ref3, rtol=1e-4, atol=1e-4), float(jnp.max(jnp.abs(res3 - ref3)))

    print("KERNEL_OK")
</pallas_src>

<mosaic_0001>
module attributes {stable_mosaic.version = 11 : i64} {
  func.func @_irfft_matmul_kernel(%arg0: i32, %arg1: memref<8x16xbf16, #tpu.memory_space<vmem>>, %arg2: memref<16x128xbf16, #tpu.memory_space<vmem>>, %arg3: memref<8x128xf32, #tpu.memory_space<vmem>>) attributes {dimension_semantics = [#tpu.dimension_semantics<parallel>], iteration_bounds = array<i64: 1>, scalar_prefetch = 0 : i64, scratch_operands = 0 : i64, tpu.core_type = #tpu.core_type<tc>, window_params = [{transform_indices = @transform_0, window_bounds = array<i64: 8, 16>}, {pipeline_mode = #tpu.pipeline_mode<synchronous>, transform_indices = @transform_1, window_bounds = array<i64: 16, 128>}, {transform_indices = @transform_2, window_bounds = array<i64: 8, 128>}]} {
    %c0 = arith.constant 0 : index
    %c0_0 = arith.constant 0 : index
    %0 = vector.load %arg1[%c0, %c0_0] : memref<8x16xbf16, #tpu.memory_space<vmem>>, vector<8x16xbf16>
    %c0_1 = arith.constant 0 : index
    %c0_2 = arith.constant 0 : index
    %1 = vector.load %arg2[%c0_1, %c0_2] : memref<16x128xbf16, #tpu.memory_space<vmem>>, vector<16x128xbf16>
    %cst = arith.constant dense<0.000000e+00> : vector<8x128xf32>
    %2 = tpu.matmul %0, %1, %cst {dimension_numbers = #tpu.dot_dimension_numbers<[1], [0], [0], [1], [0, 0, 1, 1], [], []>} : vector<8x16xbf16>, vector<16x128xbf16>, vector<8x128xf32> -> vector<8x128xf32>
    %c0_3 = arith.constant 0 : index
    %c0_4 = arith.constant 0 : index
    %3 = vector.load %arg3[%c0_3, %c0_4] : memref<8x128xf32, #tpu.memory_space<vmem>>, vector<8x128xf32>
    tpu.vector_store %arg3[%c0_3, %c0_4], %2 {strides = array<i32>} : memref<8x128xf32, #tpu.memory_space<vmem>>, vector<8x128xf32>,
    return
  }
  func.func @transform_0(%arg0: i32) -> (i32, i32) {
    %c0_i32 = arith.constant 0 : i32
    %c0_i32_0 = arith.constant 0 : i32
    return %arg0, %c0_i32 : i32, i32
  }
  func.func @transform_1(%arg0: i32) -> (i32, i32) {
    %c0_i32 = arith.constant 0 : i32
    %c0_i32_0 = arith.constant 0 : i32
    %c0_i32_1 = arith.constant 0 : i32
    return %c0_i32, %c0_i32_0 : i32, i32
  }
  func.func @transform_2(%arg0: i32) -> (i32, i32) {
    %c0_i32 = arith.constant 0 : i32
    %c0_i32_0 = arith.constant 0 : i32
    return %arg0, %c0_i32 : i32, i32
  }
}

</mosaic_0001>

<llo_original>
// kernel: tpu_custom_call.1
$region0: #{tpu_custom_call.1}
  #allocation0 [shape = 'u32[]', space=smem, size = 0x4, offset = 0x4, fixed_abs, tag = 'smem constant byte address 0x4 - core index']
  #allocation1 [shape = 'u32[144,128]{1,0:T(1,128)}', space=vmem, size = 0x12000, scoped, tag = 'internal scratch']
  %s0 = inlined_call_operand.hbm [shape: bf16[8,16], index: 0, kind: input, shape index: {}]
  %s1 = inlined_call_operand.hbm [shape: bf16[16,128], index: 1, kind: input, shape index: {}]
  %s2 = inlined_call_operand.hbm [shape: f32[8,128], index: 2, kind: output, shape index: {}]
  %s3 = sld [smem:[#allocation0]]
  $region26: #{tpu_custom_call.1} parent=0
    _
  %s5 = ssub.s32 1, %s3
  %s6 = scalar_select 0, %s5, %s3
  $region1: #{tpu_custom_call.1} parent=0
    #allocation2 [shape = 'u8[2048]{0}', space=vmem, size = 0x800, scoped, tag = 'input window, operand 0, single buffered']
    #allocation3 [shape = 's32[1]{0}', space=sflag, size = 0x4, scoped, tag = 'scoped memory for tpu_custom_call.1']
    #allocation4 [shape = 's32[1]{0}', space=sflag, size = 0x4, scoped, tag = 'scoped memory for tpu_custom_call.1']
    #allocation5 [shape = 'u8[4096]{0}', space=vmem, size = 0x1000, scoped, tag = 'input window, operand 1, single buffered']
    #allocation6 [shape = 's32[1]{0}', space=sflag, size = 0x4, scoped, tag = 'scoped memory for tpu_custom_call.1']
    #allocation7 [shape = 'u8[4096]{0}', space=vmem, size = 0x1000, scoped, tag = 'output window, operand 0, single buffered']
    %7 = vsyncpa [#allocation3], 0
    %8 = vsyncpa [#allocation6], 0
    %9 = vsyncpa [#allocation4], 0
    // Predicated region
    $region2: #{tpu_custom_call.1} parent=1 // pred_check
      _
    $region3: #{tpu_custom_call.1} parent=1 // pred_check_branch
      %11 = sbr.rel (0) target = $region5
    $region4: #{tpu_custom_call.1} parent=1 // pred_region
      %s13 = ssub.s32 64, 64
      %14 = vsyncadd [#allocation3], %s13
      %s16 = sshll.u32 [#allocation2], 4
      %s17 = int_to_ptr.vmem [resolvable:$true] %s16
      %19 = dma.hbm_to_vmem [thread:$0]  %s0, 64, %s17, [#allocation3]
    $region5: #{tpu_custom_call.1} parent=1 // pred_fallthru
      _
    // Predicated region
    $region6: #{tpu_custom_call.1} parent=1 // pred_check
      _
    $region7: #{tpu_custom_call.1} parent=1 // pred_check_branch
      %21 = sbr.rel (0) target = $region9
    $region8: #{tpu_custom_call.1} parent=1 // pred_region
      %s23 = ssub.s32 128, 128
      %24 = vsyncadd [#allocation6], %s23
      %s25 = sshll.u32 [#allocation5], 4
      %s26 = int_to_ptr.vmem [resolvable:$true] %s25
      %31 = dma.hbm_to_vmem [thread:$0]  %s1, 128, %s26, [#allocation6], 64, 64, 4
    $region9: #{tpu_custom_call.1} parent=1 // pred_fallthru
      _
    // Predicated region
    $region10: #{tpu_custom_call.1} parent=1 // pred_check
      _
    $region11: #{tpu_custom_call.1} parent=1 // pred_check_branch
      %33 = sbr.rel (0) target = $region13
    $region12: #{tpu_custom_call.1} parent=1 // pred_region
      %34 = dma.done [#allocation3], 64
    $region13: #{tpu_custom_call.1} parent=1 // pred_fallthru
      _
    // Predicated region
    $region14: #{tpu_custom_call.1} parent=1 // pred_check
      _
    $region15: #{tpu_custom_call.1} parent=1 // pred_check_branch
      %36 = sbr.rel (0) target = $region17
    $region16: #{tpu_custom_call.1} parent=1 // pred_region
      %37 = dma.done [#allocation6], 128
    $region17: #{tpu_custom_call.1} parent=1 // pred_fallthru
      _
    %v39 = vld [vmem:[#allocation2] sm:$0xf]
    %v40 = vld [vmem:[#allocation5] sm:$0xf]
    %v41 = vld [vmem:[#allocation5 + $0x4] sm:$0xf]
    %v44 = vunpack.c.l.b16 %v40
    %v45 = vunpack.c.l.b16 %v41
    %v46 = vpack.c.b16 %v45, %v44
    %vm48 = vcmask 130048
    %v50 = vsel %vm48, %v39, 0
    %52 = vmatprep.subr.bf16.mxu0 0
    %53 = vmatpush1.bf16.msra.mxu0 %v46
    %54 = vmatprep.subr.bf16.mxu0 0
    %55 = vmatpush1.bf16.msra.mxu0 0
    %56 = vmatprep.subr.bf16.mxu0 0
    %57 = vmatpush1.bf16.msra.mxu0 0
    %58 = vmatprep.subr.bf16.mxu0 0
    %59 = vmatpush1.bf16.msra.mxu0 0
    %60 = vmatprep.subr.bf16.mxu0 0
    %61 = vmatpush1.bf16.msra.mxu0 0
    %62 = vmatprep.subr.bf16.mxu0 0
    %63 = vmatpush1.bf16.msra.mxu0 0
    %64 = vmatprep.subr.bf16.mxu0 0
    %65 = vmatpush1.bf16.msra.mxu0 0
    %66 = vmatprep.subr.bf16.mxu0 0
    %67 = vmatpush1.bf16.msra.mxu0 0
    %68 = vmatprep.subr.bf16.mxu0 0
    %69 = vmatpush1.bf16.msra.mxu0 0
    %70 = vmatprep.subr.bf16.mxu0 0
    %71 = vmatpush1.bf16.msra.mxu0 0
    %72 = vmatprep.subr.bf16.mxu0 0
    %73 = vmatpush1.bf16.msra.mxu0 0
    %74 = vmatprep.subr.bf16.mxu0 0
    %75 = vmatpush1.bf16.msra.mxu0 0
    %76 = vmatprep.subr.bf16.mxu0 0
    %77 = vmatpush1.bf16.msra.mxu0 0
    %78 = vmatprep.subr.bf16.mxu0 0
    %79 = vmatpush1.bf16.msra.mxu0 0
    %80 = vmatprep.subr.bf16.mxu0 0
    %81 = vmatpush1.bf16.msra.mxu0 0
    %82 = vmatprep.subr.bf16.mxu0 0
    %83 = vmatpush1.bf16.msra.mxu0 0
    %84 = vmatprep.mubr.bf16.mxu0 0
    %85 = vmatmul.mubr.bf16.gmra.mrb[0].mxu0 %v50
    %v86 = vpop.f32.mrb[0].mxu0
    %v87 = vadd.f32 0.0, %v86
    %v88 = vpop.f32.mrb[0].mxu0
    %v89 = vpop.f32.mrb[0].mxu0
    %v90 = vpop.f32.mrb[0].mxu0
    %91 = vdwg.mxu0
    %92 = vst [vmem:[#allocation7] sm:$0xff] %v87
    // Predicated region
    $region18: #{tpu_custom_call.1} parent=1 // pred_check
      _
    $region19: #{tpu_custom_call.1} parent=1 // pred_check_branch
      %94 = sbr.rel (0) target = $region21
    $region20: #{tpu_custom_call.1} parent=1 // pred_region
      %s96 = ssub.s32 128, 128
      %97 = vsyncadd [#allocation4], %s96
      %s99 = sshll.u32 [#allocation7], 4
      %s100 = int_to_ptr.vmem [resolvable:$true] %s99
      %102 = dma.vmem_to_hbm [thread:$0]  %s100, 128, %s2, [#allocation4]
    $region21: #{tpu_custom_call.1} parent=1 // pred_fallthru
      _
    // Predicated region
    $region22: #{tpu_custom_call.1} parent=1 // pred_check
      _
    $region23: #{tpu_custom_call.1} parent=1 // pred_check_branch
      %104 = sbr.rel (0) target = $region25
    $region24: #{tpu_custom_call.1} parent=1 // pred_region
      %105 = dma.done [#allocation4], 128
    $region25: #{tpu_custom_call.1} parent=1 // pred_fallthru
      _
    %106 = vsyncpa [#allocation3], 1
    %107 = vsyncpa [#allocation6], 1
    %108 = vsyncpa [#allocation4], 1

</llo_original>
